<compile_context>
chip_gen: v7x
topology: tpu7x:2x2x1
jax: 0.10.0
libtpu: 0.0.40
codegen_flags: <defaults>
</compile_context>

<pallas_src>
import jax
import jax.numpy as jnp
from jax import lax
from jax.experimental import pallas as pl
from jax.experimental.pallas import tpu as pltpu
import numpy as np


def _round_up(x, m):
    return pl.cdiv(x, m) * m


def features_linear_kernel(idx_ref, table_ref, bias_ref, out_ref):
    # idx_ref  : (TB, NF)    int32   VMEM
    # table_ref: (FDp, ODp)  float32 VMEM (full, zero-padded table; constant block)
    # bias_ref : (1, ODp)    float32 VMEM (zero-padded bias; constant block)
    # out_ref  : (TB, ODp)   float32 VMEM (lane-dense: ODp % 128 == 0)
    idx = idx_ref[...]                                   # (TB, NF)
    tb, nf = idx.shape
    fdp = table_ref.shape[0]

    # Per-row vocabulary counts via NF unrolled 2-D lane compares (no 3-D
    # intermediate, no sublane reduction). NF is a small static Python int.
    lane_ids = lax.broadcasted_iota(jnp.int32, (tb, fdp), 1)   # (TB, FDp)
    counts = jnp.zeros((tb, fdp), jnp.float32)
    for f in range(nf):                                         # static unroll
        counts = counts + (idx[:, f:f + 1] == lane_ids).astype(jnp.float32)

    # counts @ table == sum over fields of gathered embedding rows (MXU).
    acc = jnp.dot(counts, table_ref[...], preferred_element_type=jnp.float32)
    out_ref[...] = acc + bias_ref[...]                          # bias broadcast over TB


def features_linear(x_idx, table, bias, *, batch_tile=256):
    """x_idx: (B, NF) int, table: (FD, OD) f32, bias: (OD,) f32 -> (B, OD) f32."""
    B, NF = x_idx.shape
    FD, OD = table.shape

    # ---- wrapper-side layout plumbing (zero extra compute in the kernel) ----
    # Lane-align vocab and output dims; padded table rows/cols are exactly zero.
    FDp = int(_round_up(FD, 128))
    ODp = int(_round_up(OD, 128))
    table_p = jnp.zeros((FDp, ODp), jnp.float32).at[:FD, :OD].set(
        table.astype(jnp.float32))
    bias_p = jnp.zeros((1, ODp), jnp.float32).at[0, :OD].set(
        bias.astype(jnp.float32))

    # Batch tile: as large as requested, multiple of 8 (sublane), no bigger than
    # the (8-rounded) batch. Pad batch to a tile multiple instead of asserting.
    tb = max(8, min(int(batch_tile), int(_round_up(B, 8))))
    tb = (tb // 8) * 8
    Bp = int(_round_up(B, tb))
    x_p = x_idx.astype(jnp.int32)
    if Bp != B:
        x_p = jnp.zeros((Bp, NF), jnp.int32).at[:B, :].set(x_p)

    grid = (Bp // tb,)
    out_p = pl.pallas_call(
        features_linear_kernel,
        out_shape=jax.ShapeDtypeStruct((Bp, ODp), jnp.float32),
        grid_spec=pltpu.PrefetchScalarGridSpec(
            num_scalar_prefetch=0,
            grid=grid,
            in_specs=[
                pl.BlockSpec((tb, NF), lambda i: (i, 0)),     # index tile
                pl.BlockSpec((FDp, ODp), lambda i: (0, 0)),   # full table (constant block)
                pl.BlockSpec((1, ODp), lambda i: (0, 0)),     # bias (constant block)
            ],
            out_specs=pl.BlockSpec((tb, ODp), lambda i: (i, 0)),
        ),
        compiler_params=pltpu.CompilerParams(
            dimension_semantics=("parallel",),   # shards across v7x's 2 TCs
            vmem_limit_bytes=64 * 1024 * 1024,
        ),
    )(x_p, table_p, bias_p)

    return out_p[:B, :OD]


if __name__ == "__main__":
    # Module hyperparameters (synthetic, small).
    field_dims = 32   # embedding vocabulary size
    output_dim = 16
    batch = 16
    num_fields = 4

    key = jax.random.PRNGKey(0)
    k_idx, k_emb = jax.random.split(key)

    # Deterministic parameter init (nn.Embedding weight ~ N(0,1); bias = zeros).
    table = jax.random.normal(k_emb, (field_dims, output_dim), dtype=jnp.float32)
    bias = jnp.zeros((output_dim,), dtype=jnp.float32)

    # Input: integer field ids, (batch, num_fields).
    x_idx = jax.random.randint(k_idx, (batch, num_fields), 0, field_dims,
                               dtype=jnp.int32)

    out = features_linear(x_idx, table, bias)
    out = jax.block_until_ready(out)

    # Pure-JAX reference: gather -> sum over fields -> + bias.
    ref = jnp.sum(jnp.take(table, x_idx, axis=0), axis=1) + bias
    np.testing.assert_allclose(np.asarray(out), np.asarray(ref),
                               rtol=1e-5, atol=1e-5)
    print("KERNEL_OK")
</pallas_src>

<mosaic_0001>
module attributes {stable_mosaic.version = 11 : i64} {
  func.func @features_linear_kernel(%arg0: i32, %arg1: memref<16x4xi32, #tpu.memory_space<vmem>>, %arg2: memref<128x128xf32, #tpu.memory_space<vmem>>, %arg3: memref<1x128xf32, #tpu.memory_space<vmem>>, %arg4: memref<16x128xf32, #tpu.memory_space<vmem>>) attributes {dimension_semantics = [#tpu.dimension_semantics<parallel>], iteration_bounds = array<i64: 1>, scalar_prefetch = 0 : i64, scratch_operands = 0 : i64, tpu.core_type = #tpu.core_type<tc>, window_params = [{transform_indices = @transform_0, window_bounds = array<i64: 16, 4>}, {pipeline_mode = #tpu.pipeline_mode<synchronous>, transform_indices = @transform_1, window_bounds = array<i64: 128, 128>}, {pipeline_mode = #tpu.pipeline_mode<synchronous>, transform_indices = @transform_2, window_bounds = array<i64: 1, 128>}, {transform_indices = @transform_3, window_bounds = array<i64: 16, 128>}]} {
    %c0 = arith.constant 0 : index
    %c0_0 = arith.constant 0 : index
    %0 = vector.load %arg1[%c0, %c0_0] : memref<16x4xi32, #tpu.memory_space<vmem>>, vector<16x4xi32>
    %1 = tpu.iota {dimensions = array<i32: 1>} : vector<16x128xi32>
    %cst = arith.constant 0.000000e+00 : f32
    %2 = vector.broadcast %cst : f32 to vector<16x128xf32>
    %3 = vector.extract_strided_slice %0 {offsets = [0, 0], sizes = [16, 1], strides = [1, 1]} : vector<16x4xi32> to vector<16x1xi32>
    %4 = vector.broadcast %3 : vector<16x1xi32> to vector<16x128xi32>
    %5 = arith.cmpi eq, %4, %1 : vector<16x128xi32>
    %6 = arith.extui %5 : vector<16x128xi1> to vector<16x128xi32>
    %7 = arith.sitofp %6 : vector<16x128xi32> to vector<16x128xf32>
    %8 = arith.addf %2, %7 : vector<16x128xf32>
    %9 = vector.extract_strided_slice %0 {offsets = [0, 1], sizes = [16, 1], strides = [1, 1]} : vector<16x4xi32> to vector<16x1xi32>
    %10 = vector.broadcast %9 : vector<16x1xi32> to vector<16x128xi32>
    %11 = arith.cmpi eq, %10, %1 : vector<16x128xi32>
    %12 = arith.extui %11 : vector<16x128xi1> to vector<16x128xi32>
    %13 = arith.sitofp %12 : vector<16x128xi32> to vector<16x128xf32>
    %14 = arith.addf %8, %13 : vector<16x128xf32>
    %15 = vector.extract_strided_slice %0 {offsets = [0, 2], sizes = [16, 1], strides = [1, 1]} : vector<16x4xi32> to vector<16x1xi32>
    %16 = vector.broadcast %15 : vector<16x1xi32> to vector<16x128xi32>
    %17 = arith.cmpi eq, %16, %1 : vector<16x128xi32>
    %18 = arith.extui %17 : vector<16x128xi1> to vector<16x128xi32>
    %19 = arith.sitofp %18 : vector<16x128xi32> to vector<16x128xf32>
    %20 = arith.addf %14, %19 : vector<16x128xf32>
    %21 = vector.extract_strided_slice %0 {offsets = [0, 3], sizes = [16, 1], strides = [1, 1]} : vector<16x4xi32> to vector<16x1xi32>
    %22 = vector.broadcast %21 : vector<16x1xi32> to vector<16x128xi32>
    %23 = arith.cmpi eq, %22, %1 : vector<16x128xi32>
    %24 = arith.extui %23 : vector<16x128xi1> to vector<16x128xi32>
    %25 = arith.sitofp %24 : vector<16x128xi32> to vector<16x128xf32>
    %26 = arith.addf %20, %25 : vector<16x128xf32>
    %c0_1 = arith.constant 0 : index
    %c0_2 = arith.constant 0 : index
    %27 = vector.load %arg2[%c0_1, %c0_2] : memref<128x128xf32, #tpu.memory_space<vmem>>, vector<128x128xf32>
    %cst_3 = arith.constant dense<0.000000e+00> : vector<16x128xf32>
    %28 = tpu.matmul %26, %27, %cst_3 {dimension_numbers = #tpu.dot_dimension_numbers<[1], [0], [0], [1], [0, 0, 1, 1], [], []>} : vector<16x128xf32>, vector<128x128xf32>, vector<16x128xf32> -> vector<16x128xf32>
    %c0_4 = arith.constant 0 : index
    %c0_5 = arith.constant 0 : index
    %29 = vector.load %arg3[%c0_4, %c0_5] : memref<1x128xf32, #tpu.memory_space<vmem>>, vector<1x128xf32>
    %30 = vector.broadcast %29 : vector<1x128xf32> to vector<16x128xf32>
    %31 = arith.addf %28, %30 : vector<16x128xf32>
    %c0_6 = arith.constant 0 : index
    %c0_7 = arith.constant 0 : index
    %32 = vector.load %arg4[%c0_6, %c0_7] : memref<16x128xf32, #tpu.memory_space<vmem>>, vector<16x128xf32>
    tpu.vector_store %arg4[%c0_6, %c0_7], %31 {strides = array<i32>} : memref<16x128xf32, #tpu.memory_space<vmem>>, vector<16x128xf32>,
    return
  }
  func.func @transform_0(%arg0: i32) -> (i32, i32) {
    %c0_i32 = arith.constant 0 : i32
    %c0_i32_0 = arith.constant 0 : i32
    return %arg0, %c0_i32 : i32, i32
  }
  func.func @transform_1(%arg0: i32) -> (i32, i32) {
    %c0_i32 = arith.constant 0 : i32
    %c0_i32_0 = arith.constant 0 : i32
    %c0_i32_1 = arith.constant 0 : i32
    return %c0_i32, %c0_i32_0 : i32, i32
  }
  func.func @transform_2(%arg0: i32) -> (i32, i32) {
    %c0_i32 = arith.constant 0 : i32
    %c0_i32_0 = arith.constant 0 : i32
    %c0_i32_1 = arith.constant 0 : i32
    return %c0_i32, %c0_i32_0 : i32, i32
  }
  func.func @transform_3(%arg0: i32) -> (i32, i32) {
    %c0_i32 = arith.constant 0 : i32
    %c0_i32_0 = arith.constant 0 : i32
    return %arg0, %c0_i32 : i32, i32
  }
}

</mosaic_0001>

<llo_original>
// kernel: tpu_custom_call.1
$region0: #{tpu_custom_call.1}
  #allocation0 [shape = 'u32[]', space=smem, size = 0x4, offset = 0x4, fixed_abs, tag = 'smem constant byte address 0x4 - core index']
  #allocation1 [shape = 'u32[144,128]{1,0:T(1,128)}', space=vmem, size = 0x12000, scoped, tag = 'internal scratch']
  %s0 = inlined_call_operand.hbm [shape: s32[16,4], index: 0, kind: input, shape index: {}]
  %s1 = inlined_call_operand.hbm [shape: f32[128,128], index: 1, kind: input, shape index: {}]
  %s2 = inlined_call_operand.hbm [shape: f32[1,128], index: 2, kind: input, shape index: {}]
  %s3 = inlined_call_operand.hbm [shape: f32[16,128], index: 3, kind: output, shape index: {}]
  %s4 = sld [smem:[#allocation0]]
  $region34: #{tpu_custom_call.1} parent=0
    _
  %s6 = ssub.s32 1, %s4
  %s7 = scalar_select 0, %s6, %s4
  $region1: #{tpu_custom_call.1} parent=0
    #allocation2 [shape = 'u8[8192]{0}', space=vmem, size = 0x2000, scoped, tag = 'input window, operand 0, single buffered']
    #allocation3 [shape = 's32[1]{0}', space=sflag, size = 0x4, scoped, tag = 'scoped memory for tpu_custom_call.1']
    #allocation4 [shape = 's32[1]{0}', space=sflag, size = 0x4, scoped, tag = 'scoped memory for tpu_custom_call.1']
    #allocation5 [shape = 'u8[65536]{0}', space=vmem, size = 0x10000, scoped, tag = 'input window, operand 1, single buffered']
    #allocation6 [shape = 's32[1]{0}', space=sflag, size = 0x4, scoped, tag = 'scoped memory for tpu_custom_call.1']
    #allocation7 [shape = 'u8[512]{0}', space=vmem, size = 0x400, scoped, tag = 'input window, operand 2, single buffered']
    #allocation8 [shape = 'u8[8192]{0}', space=vmem, size = 0x2000, scoped, tag = 'output window, operand 0, single buffered']
    %8 = vsyncpa [#allocation3], 0
    %9 = vsyncpa [#allocation6], 0
    %10 = vsyncpa [#allocation4], 0
    // Predicated region
    $region2: #{tpu_custom_call.1} parent=1 // pred_check
      _
    $region3: #{tpu_custom_call.1} parent=1 // pred_check_branch
      %12 = sbr.rel (0) target = $region5
    $region4: #{tpu_custom_call.1} parent=1 // pred_region
      %s14 = ssub.s32 256, 256
      %15 = vsyncadd [#allocation3], %s14
      %s16 = sshll.u32 [#allocation2], 4
      %s17 = int_to_ptr.vmem [resolvable:$true] %s16
      %22 = dma.hbm_to_vmem [thread:$0]  %s0, 256, %s17, [#allocation3], 128, 128, 8
    $region5: #{tpu_custom_call.1} parent=1 // pred_fallthru
      _
    // Predicated region
    $region6: #{tpu_custom_call.1} parent=1 // pred_check
      _
    $region7: #{tpu_custom_call.1} parent=1 // pred_check_branch
      %24 = sbr.rel (0) target = $region9
    $region8: #{tpu_custom_call.1} parent=1 // pred_region
      %s26 = ssub.s32 2048, 2048
      %27 = vsyncadd [#allocation6], %s26
      %s28 = sshll.u32 [#allocation5], 4
      %s29 = int_to_ptr.vmem [resolvable:$true] %s28
      %34 = dma.hbm_to_vmem [thread:$0]  %s1, 2048, %s29, [#allocation6], 128, 128, 8
    $region9: #{tpu_custom_call.1} parent=1 // pred_fallthru
      _
    // Predicated region
    $region10: #{tpu_custom_call.1} parent=1 // pred_check
      _
    $region11: #{tpu_custom_call.1} parent=1 // pred_check_branch
      %36 = sbr.rel (0) target = $region13
    $region12: #{tpu_custom_call.1} parent=1 // pred_region
      %s38 = ssub.s32 16, 16
      %39 = vsyncadd [#allocation6], %s38
      %s41 = sshll.u32 [#allocation7], 4
      %s42 = int_to_ptr.vmem [resolvable:$true] %s41
      %44 = dma.hbm_to_vmem [thread:$0]  %s2, 16, %s42, [#allocation6]
    $region13: #{tpu_custom_call.1} parent=1 // pred_fallthru
      _
    // Predicated region
    $region14: #{tpu_custom_call.1} parent=1 // pred_check
      _
    $region15: #{tpu_custom_call.1} parent=1 // pred_check_branch
      %46 = sbr.rel (0) target = $region17
    $region16: #{tpu_custom_call.1} parent=1 // pred_region
      %47 = dma.done [#allocation3], 256
    $region17: #{tpu_custom_call.1} parent=1 // pred_fallthru
      _
    // Predicated region
    $region18: #{tpu_custom_call.1} parent=1 // pred_check
      _
    $region19: #{tpu_custom_call.1} parent=1 // pred_check_branch
      %49 = sbr.rel (0) target = $region21
    $region20: #{tpu_custom_call.1} parent=1 // pred_region
      %50 = dma.done [#allocation6], 2048
    $region21: #{tpu_custom_call.1} parent=1 // pred_fallthru
      _
    // Predicated region
    $region22: #{tpu_custom_call.1} parent=1 // pred_check
      _
    $region23: #{tpu_custom_call.1} parent=1 // pred_check_branch
      %52 = sbr.rel (0) target = $region25
    $region24: #{tpu_custom_call.1} parent=1 // pred_region
      %53 = dma.done [#allocation6], 16
    $region25: #{tpu_custom_call.1} parent=1 // pred_fallthru
      _
    %v54 = vld [vmem:[#allocation2] sm:$0xff]
    %v55 = vld [vmem:[#allocation2 + $0x8] sm:$0xff]
    %v56 = vlaneseq
    %v57 = vand.u32 %v56, 127
    %58 = vset.pattern.permute.xlu0 0
    %59 = vperm.xlu0 %58, %v54
    %v60 = vpop.permute.xlu0 %59
    %61 = vset.pattern.permute.xlu0 0
    %62 = vperm.xlu0 %61, %v55
    %v63 = vpop.permute.xlu0 %62
    %vm64 = vcmp.eq.s32.totalorder %v60, %v57
    %vm65 = vcmp.eq.s32.totalorder %v63, %v57
    %v66 = vsel %vm64, 1, 0
    %v67 = vsel %vm65, 1, 0
    %v68 = vcvt.s32.f32 %v66
    %v69 = vcvt.s32.f32 %v67
    %v70 = vadd.f32 %v68, 0.0
    %v71 = vadd.f32 %v69, 0.0
    %72 = vset.pattern.permute.xlu0 1
    %73 = vperm.xlu0 %72, %v54
    %v74 = vpop.permute.xlu0 %73
    %75 = vset.pattern.permute.xlu0 1
    %76 = vperm.xlu0 %75, %v55
    %v77 = vpop.permute.xlu0 %76
    %vm78 = vcmp.eq.s32.totalorder %v74, %v57
    %vm79 = vcmp.eq.s32.totalorder %v77, %v57
    %v80 = vsel %vm78, 1, 0
    %v81 = vsel %vm79, 1, 0
    %v82 = vcvt.s32.f32 %v80
    %v83 = vcvt.s32.f32 %v81
    %v84 = vadd.f32 %v70, %v82
    %v85 = vadd.f32 %v71, %v83
    %86 = vset.pattern.permute.xlu0 2
    %87 = vperm.xlu0 %86, %v54
    %v88 = vpop.permute.xlu0 %87
    %89 = vset.pattern.permute.xlu0 2
    %90 = vperm.xlu0 %89, %v55
    %v91 = vpop.permute.xlu0 %90
    %vm92 = vcmp.eq.s32.totalorder %v88, %v57
    %vm93 = vcmp.eq.s32.totalorder %v91, %v57
    %v94 = vsel %vm92, 1, 0
    %v95 = vsel %vm93, 1, 0
    %v96 = vcvt.s32.f32 %v94
    %v97 = vcvt.s32.f32 %v95
    %v98 = vadd.f32 %v84, %v96
    %v99 = vadd.f32 %v85, %v97
    %100 = vset.pattern.permute.xlu0 3
    %101 = vperm.xlu0 %100, %v54
    %v102 = vpop.permute.xlu0 %101
    %103 = vset.pattern.permute.xlu0 3
    %104 = vperm.xlu0 %103, %v55
    %v105 = vpop.permute.xlu0 %104
    %vm106 = vcmp.eq.s32.totalorder %v102, %v57
    %vm107 = vcmp.eq.s32.totalorder %v105, %v57
    %v108 = vsel %vm106, 1, 0
    %v109 = vsel %vm107, 1, 0
    %v110 = vcvt.s32.f32 %v108
    %v111 = vcvt.s32.f32 %v109
    %v112 = vadd.f32 %v98, %v110
    %v113 = vadd.f32 %v99, %v111
    %v114 = vld [vmem:[#allocation5] sm:$0xff]
    %v115 = vld [vmem:[#allocation5 + $0x8] sm:$0xff]
    %v116 = vld [vmem:[#allocation5 + $0x10] sm:$0xff]
    %v117 = vld [vmem:[#allocation5 + $0x18] sm:$0xff]
    %v118 = vld [vmem:[#allocation5 + $0x20] sm:$0xff]
    %v119 = vld [vmem:[#allocation5 + $0x28] sm:$0xff]
    %v120 = vld [vmem:[#allocation5 + $0x30] sm:$0xff]
    %v121 = vld [vmem:[#allocation5 + $0x38] sm:$0xff]
    %v122 = vld [vmem:[#allocation5 + $0x40] sm:$0xff]
    %v123 = vld [vmem:[#allocation5 + $0x48] sm:$0xff]
    %v124 = vld [vmem:[#allocation5 + $0x50] sm:$0xff]
    %v125 = vld [vmem:[#allocation5 + $0x58] sm:$0xff]
    %v126 = vld [vmem:[#allocation5 + $0x60] sm:$0xff]
    %v127 = vld [vmem:[#allocation5 + $0x68] sm:$0xff]
    %v128 = vld [vmem:[#allocation5 + $0x70] sm:$0xff]
    %v129 = vld [vmem:[#allocation5 + $0x78] sm:$0xff]
    %v130 = vld [vmem:[#allocation7] sm:$0x1]
    %v132 = vlaneseq
    %v133 = vshrl.u32 %v132, 7
    %v134 = vsub.s32 0, %v133
    %v135 = vrot.slane %v130, %v134
    %137 = vmatprep.subr.mxu0 0.0
    %138 = vmatpush1.msra.mxu0 %v114
    %139 = vmatprep.subr.mxu0 0.0
    %140 = vmatpush1.msra.mxu0 %v115
    %141 = vmatprep.subr.mxu0 0.0
    %142 = vmatpush1.msra.mxu0 %v116
    %143 = vmatprep.subr.mxu0 0.0
    %144 = vmatpush1.msra.mxu0 %v117
    %145 = vmatprep.subr.mxu0 0.0
    %146 = vmatpush1.msra.mxu0 %v118
    %147 = vmatprep.subr.mxu0 0.0
    %148 = vmatpush1.msra.mxu0 %v119
    %149 = vmatprep.subr.mxu0 0.0
    %150 = vmatpush1.msra.mxu0 %v120
    %151 = vmatprep.subr.mxu0 0.0
    %152 = vmatpush1.msra.mxu0 %v121
    %153 = vmatprep.subr.mxu0 0.0
    %154 = vmatpush1.msra.mxu0 %v122
    %155 = vmatprep.subr.mxu0 0.0
    %156 = vmatpush1.msra.mxu0 %v123
    %157 = vmatprep.subr.mxu0 0.0
    %158 = vmatpush1.msra.mxu0 %v124
    %159 = vmatprep.subr.mxu0 0.0
    %160 = vmatpush1.msra.mxu0 %v125
    %161 = vmatprep.subr.mxu0 0.0
    %162 = vmatpush1.msra.mxu0 %v126
    %163 = vmatprep.subr.mxu0 0.0
    %164 = vmatpush1.msra.mxu0 %v127
    %165 = vmatprep.subr.mxu0 0.0
    %166 = vmatpush1.msra.mxu0 %v128
    %167 = vmatprep.subr.mxu0 0.0
    %168 = vmatpush1.msra.mxu0 %v129
    %169 = vmatprep.subr.mxu0 0.0
    %170 = vmatpush1.msra.mxu0 0.0
    %171 = vmatprep.subr.mxu0 0.0
    %172 = vmatpush1.msra.mxu0 0.0
    %173 = vmatprep.subr.mxu0 0.0
    %174 = vmatpush1.msra.mxu0 0.0
    %175 = vmatprep.subr.mxu0 0.0
    %176 = vmatpush1.msra.mxu0 0.0
    %177 = vmatprep.subr.mxu0 0.0
    %178 = vmatpush1.msra.mxu0 0.0
    %179 = vmatprep.subr.mxu0 0.0
    %180 = vmatpush1.msra.mxu0 0.0
    %181 = vmatprep.subr.mxu0 0.0
    %182 = vmatpush1.msra.mxu0 0.0
    %183 = vmatprep.subr.mxu0 0.0
    %184 = vmatpush1.msra.mxu0 0.0
    %185 = vmatprep.subr.mxu0 0.0
    %186 = vmatpush1.msra.mxu0 0.0
    %187 = vmatprep.subr.mxu0 0.0
    %188 = vmatpush1.msra.mxu0 0.0
    %189 = vmatprep.subr.mxu0 0.0
    %190 = vmatpush1.msra.mxu0 0.0
    %191 = vmatprep.subr.mxu0 0.0
    %192 = vmatpush1.msra.mxu0 0.0
    %193 = vmatprep.subr.mxu0 0.0
    %194 = vmatpush1.msra.mxu0 0.0
    %195 = vmatprep.subr.mxu0 0.0
    %196 = vmatpush1.msra.mxu0 0.0
    %197 = vmatprep.subr.mxu0 0.0
    %198 = vmatpush1.msra.mxu0 0.0
    %199 = vmatprep.subr.mxu0 0.0
    %200 = vmatpush1.msra.mxu0 0.0
    %201 = vmatprep.mubr.f32.mxu0 0.0
    %202 = vmatmul.mubr.f32.gmra.mrb[0].mxu0 %v112
    %v203 = vpop.f32.mrb[0].mxu0
    %v204 = vadd.f32 %v135, %v203
    %v205 = vpop.f32.mrb[0].mxu0
    %206 = vmatprep.mubr.f32.mxu0 0.0
    %207 = vmatmul.mubr.f32.gmra.mrb[0].mxu0 %v113
    %v208 = vpop.f32.mrb[0].mxu0
    %v209 = vadd.f32 %v135, %v208
    %v210 = vpop.f32.mrb[0].mxu0
    %211 = vdwg.mxu0
    %212 = vst [vmem:[#allocation8] sm:$0xff] %v204
    %213 = vst [vmem:[#allocation8 + $0x8] sm:$0xff] %v209
    // Predicated region
    $region26: #{tpu_custom_call.1} parent=1 // pred_check
      _
    $region27: #{tpu_custom_call.1} parent=1 // pred_check_branch
      %215 = sbr.rel (0) target = $region29
    $region28: #{tpu_custom_call.1} parent=1 // pred_region
      %s217 = ssub.s32 256, 256
      %218 = vsyncadd [#allocation4], %s217
      %s219 = sshll.u32 [#allocation8], 4
      %s220 = int_to_ptr.vmem [resolvable:$true] %s219
      %225 = dma.vmem_to_hbm [thread:$0]  %s220, 256, %s3, [#allocation4], 128, 128, 8
    $region29: #{tpu_custom_call.1} parent=1 // pred_fallthru
      _
    // Predicated region
    $region30: #{tpu_custom_call.1} parent=1 // pred_check
      _
    $region31: #{tpu_custom_call.1} parent=1 // pred_check_branch
      %227 = sbr.rel (0) target = $region33
    $region32: #{tpu_custom_call.1} parent=1 // pred_region
      %228 = dma.done [#allocation4], 256
    $region33: #{tpu_custom_call.1} parent=1 // pred_fallthru
      _
    %229 = vsyncpa [#allocation3], 1
    %230 = vsyncpa [#allocation6], 1
    %231 = vsyncpa [#allocation4], 1

</llo_original>
